<compile_context>
chip_gen: v5e
topology: v5e:2x2
jax: 0.10.0
libtpu: 0.0.40
codegen_flags: <defaults>
</compile_context>

<pallas_src>
import functools

import jax
import jax.numpy as jnp
import numpy as np
from jax import lax
from jax.experimental import pallas as pl
from jax.experimental.pallas import tpu as pltpu


# ----------------------------------------------------------------------------
# Filter construction (host-side, init-time).  Faithful numpy re-implementation
# of cv2.line(thickness=1, lineType=8) == OpenCV's 8-connected LineIterator
# with leftToRight=True, so no cv2 dependency is needed.
# ----------------------------------------------------------------------------
def _cv2_line_points(pt1, pt2):
    x, y = pt1
    x2, y2 = pt2
    dx, dy = x2 - x, y2 - y
    if dx < 0:                              # left-to-right normalization
        dx, dy = -dx, -dy
        x, y = x2, y2
    sy = 1 if dy >= 0 else -1
    dy = abs(dy)
    maj, mino = (1, 0), (0, sy)             # major = x, minor = y
    if dy > dx:                             # steep line: swap major/minor
        dx, dy = dy, dx
        maj, mino = mino, maj
    err = dx - 2 * dy
    pts = [(x, y)]
    for _ in range(dx):
        if err < 0:
            err += 2 * dx - 2 * dy
            x += maj[0] + mino[0]
            y += maj[1] + mino[1]
        else:
            err -= 2 * dy
            x += maj[0]
            y += maj[1]
        pts.append((x, y))
    return pts


def get_kernel(kernel_size, index):
    if index < kernel_size:
        start = (index, 0)
        end = (kernel_size - 1 - index, 6)
    else:
        start = (6, index - kernel_size + 1)
        end = (0, kernel_size * 2 - index - 2)
    filt = np.zeros((kernel_size, kernel_size), np.float64)
    for x, y in _cv2_line_points(start, end):   # cv2 points are (col, row)
        filt[y, x] = 1.0
    return filt / np.sum(filt)


def generate_filters(kernel_size=7, num_kernels=14):
    total_diff = (kernel_size - 1) * 2
    kernels = [get_kernel(kernel_size, i) for i in range(total_diff)]
    for _ in range(max(0, num_kernels - total_diff)):
        kernels.append(kernels[0])
    return kernels


def _build_operators(filters, H, W):
    """Constant operators fed to the kernel.

    S2[dh] : (2H, 2H) block-diagonal 0/1 row-shift matrix (zero-padded shift
             by dh-pad, applied to the stacked [pred; moire] image).
    C[dh]  : (W, F*W) banded matrix applying row dh of every filter along W,
             with the horizontal zero padding folded into the band edges.
    """
    F = len(filters)
    K = filters[0].shape[0]
    pad = (K - 1) // 2
    S2 = np.zeros((K, 2 * H, 2 * H), np.float32)
    C = np.zeros((K, W, F * W), np.float32)
    for dh in range(K):
        shift = dh - pad
        for h in range(H):
            r = h + shift
            if 0 <= r < H:
                S2[dh, h, r] = 1.0
                S2[dh, H + h, H + r] = 1.0
        for f, filt in enumerate(filters):
            for dw in range(K):
                v = float(filt[dh, dw])
                if v == 0.0:
                    continue
                for w in range(W):
                    c = w + dw - pad
                    if 0 <= c < W:
                        C[dh, c, f * W + w] = v
    return S2, C


# ----------------------------------------------------------------------------
# Pallas kernel
# ----------------------------------------------------------------------------
def _directional_loss_kernel(s2_ref, c_ref, pred_ref, moire_ref, out_ref,
                             *, K, H, W, F):
    """Grid axis 0 = batch (parallel).  pred_ref/moire_ref are (H, W) tiles."""
    # Stack the two images on the sublane axis -> one filter pass for both.
    x = jnp.concatenate(
        [pred_ref[...].astype(jnp.float32), moire_ref[...].astype(jnp.float32)],
        axis=0)                                            # (2H, W)

    acc = jnp.zeros((2 * H, F * W), jnp.float32)
    for dh in range(K):                                    # K=7, unrolled
        # Row shift (zero padded, both halves) as an MXU matmul ...
        shifted = jnp.dot(s2_ref[dh], x,
                          preferred_element_type=jnp.float32)        # (2H, W)
        # ... then all 14 filters' row-dh correlation along W in one matmul.
        acc = acc + jnp.dot(shifted, c_ref[dh],
                            preferred_element_type=jnp.float32)      # (2H, F*W)

    d = acc[:H, :] - acc[H:, :]              # per-filter (conv_pre - conv_gt)
    ad = jnp.abs(d)
    sl1 = jnp.where(ad < 1.0, 0.5 * d * d, ad - 0.5)       # SmoothL1, beta=1

    # One partial sum per batch element, written exactly once (no per-step
    # read-modify-write of a shared accumulator).
    out_ref[...] = jnp.sum(sl1, keepdims=True)


def directional_loss(pred_moire, moire, kernel_size=7, num_kernels=14):
    """Pallas implementation of DirectionalLoss.forward."""
    assert pred_moire.shape == moire.shape
    B, C, H, W = pred_moire.shape
    assert C == 1, "DirectionalLoss uses (1,1,k,k) conv weights -> C must be 1"

    filters = generate_filters(kernel_size, num_kernels)
    F = len(filters)
    S2_np, C_np = _build_operators(filters, H, W)
    s2 = jnp.asarray(S2_np)
    c = jnp.asarray(C_np)

    # Squeeze the channel dim (metadata-only reshape; no padded HBM copies).
    pred2 = pred_moire.reshape(B, H, W)
    moire2 = moire.reshape(B, H, W)

    kern = functools.partial(_directional_loss_kernel,
                             K=kernel_size, H=H, W=W, F=F)

    partial = pl.pallas_call(
        kern,
        out_shape=jax.ShapeDtypeStruct((B, 1, 1), jnp.float32),
        grid=(B,),
        in_specs=[
            # Constant operators: fetched once (index map is constant).
            pl.BlockSpec((kernel_size, 2 * H, 2 * H), lambda b: (0, 0, 0)),
            pl.BlockSpec((kernel_size, W, F * W), lambda b: (0, 0, 0)),
            # Per-batch image tiles, un-padded (padding fused into operators).
            pl.BlockSpec((None, H, W), lambda b: (b, 0, 0)),
            pl.BlockSpec((None, H, W), lambda b: (b, 0, 0)),
        ],
        out_specs=pl.BlockSpec((None, 1, 1), lambda b: (b, 0, 0)),
        compiler_params=pltpu.CompilerParams(
            # Batch axis is independent -> megacore split on v7x.
            dimension_semantics=("parallel",),
            # Tiny working set; 32 MiB is safe on v5e/v6e/v7x alike.
            vmem_limit_bytes=32 * 1024 * 1024,
        ),
    )(s2, c, pred2, moire2)

    # Each filter's SmoothL1Loss(mean) divides by B*1*H*W, then mean over the
    # F filters -> global sum / (F*B*H*W).
    return jnp.sum(partial) / (F * B * H * W)


# ----------------------------------------------------------------------------
# Pure-JAX reference mirroring the PyTorch forward (for the self-check).
# ----------------------------------------------------------------------------
def _reference_loss(pred, moire, kernel_size=7, num_kernels=14):
    filters = generate_filters(kernel_size, num_kernels)
    pad = (kernel_size - 1) // 2
    total = 0.0
    for filt in filters:
        w = jnp.asarray(filt, jnp.float32)[None, None]      # (1,1,K,K)

        def conv(x, w=w):
            return lax.conv_general_dilated(
                x.astype(jnp.float32), w, window_strides=(1, 1),
                padding=[(pad, pad), (pad, pad)],
                dimension_numbers=("NCHW", "OIHW", "NCHW"),
                precision=lax.Precision.HIGHEST)

        d = conv(pred) - conv(moire)
        ad = jnp.abs(d)
        sl1 = jnp.where(ad < 1.0, 0.5 * d * d, ad - 0.5)
        total = total + jnp.mean(sl1)
    return total / len(filters)


if __name__ == "__main__":
    key = jax.random.PRNGKey(0)
    k1, k2 = jax.random.split(key)
    B, C, H, W = 2, 1, 16, 16
    pred = jax.random.normal(k1, (B, C, H, W), dtype=jnp.float32)
    moire = jax.random.normal(k2, (B, C, H, W), dtype=jnp.float32)

    loss = jax.block_until_ready(directional_loss(pred, moire))
    ref = jax.block_until_ready(_reference_loss(pred, moire))

    np.testing.assert_allclose(np.asarray(loss), np.asarray(ref),
                               rtol=2e-3, atol=1e-4)
    print("KERNEL_OK")
</pallas_src>

<mosaic_0001>
module attributes {stable_mosaic.version = 11 : i64} {
  func.func @_directional_loss_kernel(%arg0: i32, %arg1: memref<7x32x32xf32, #tpu.memory_space<vmem>>, %arg2: memref<7x16x224xf32, #tpu.memory_space<vmem>>, %arg3: memref<1x16x16xf32, #tpu.memory_space<vmem>>, %arg4: memref<1x16x16xf32, #tpu.memory_space<vmem>>, %arg5: memref<1x1x1xf32, #tpu.memory_space<vmem>>) attributes {dimension_semantics = [#tpu.dimension_semantics<parallel>], iteration_bounds = array<i64: 2>, scalar_prefetch = 0 : i64, scratch_operands = 0 : i64, tpu.core_type = #tpu.core_type<tc>, window_params = [{pipeline_mode = #tpu.pipeline_mode<synchronous>, transform_indices = @transform_0, window_bounds = array<i64: 7, 32, 32>}, {pipeline_mode = #tpu.pipeline_mode<synchronous>, transform_indices = @transform_1, window_bounds = array<i64: 7, 16, 224>}, {transform_indices = @transform_2, window_bounds = array<i64: 1, 16, 16>}, {transform_indices = @transform_3, window_bounds = array<i64: 1, 16, 16>}, {transform_indices = @transform_4, window_bounds = array<i64: 1, 1, 1>}]} {
    %c0 = arith.constant 0 : index
    %c0_0 = arith.constant 0 : index
    %c0_1 = arith.constant 0 : index
    %0 = vector.load %arg3[%c0, %c0_0, %c0_1] : memref<1x16x16xf32, #tpu.memory_space<vmem>>, vector<1x16x16xf32>
    %1 = vector.shape_cast %0 : vector<1x16x16xf32> to vector<16x16xf32>
    %c0_2 = arith.constant 0 : index
    %c0_3 = arith.constant 0 : index
    %c0_4 = arith.constant 0 : index
    %2 = vector.load %arg4[%c0_2, %c0_3, %c0_4] : memref<1x16x16xf32, #tpu.memory_space<vmem>>, vector<1x16x16xf32>
    %3 = vector.shape_cast %2 : vector<1x16x16xf32> to vector<16x16xf32>
    %4 = tpu.concatenate %1, %3 in 0 : vector<16x16xf32>, vector<16x16xf32> -> vector<32x16xf32>
    %cst = arith.constant 0.000000e+00 : f32
    %5 = vector.broadcast %cst : f32 to vector<32x224xf32>
    %c0_5 = arith.constant 0 : index
    %c0_6 = arith.constant 0 : index
    %c0_7 = arith.constant 0 : index
    %6 = vector.load %arg1[%c0_5, %c0_6, %c0_7] : memref<7x32x32xf32, #tpu.memory_space<vmem>>, vector<1x32x32xf32>
    %7 = vector.shape_cast %6 : vector<1x32x32xf32> to vector<32x32xf32>
    %cst_8 = arith.constant dense<0.000000e+00> : vector<32x16xf32>
    %8 = tpu.matmul %7, %4, %cst_8 {dimension_numbers = #tpu.dot_dimension_numbers<[1], [0], [0], [1], [0, 0, 1, 1], [], []>} : vector<32x32xf32>, vector<32x16xf32>, vector<32x16xf32> -> vector<32x16xf32>
    %c0_9 = arith.constant 0 : index
    %c0_10 = arith.constant 0 : index
    %c0_11 = arith.constant 0 : index
    %9 = vector.load %arg2[%c0_9, %c0_10, %c0_11] : memref<7x16x224xf32, #tpu.memory_space<vmem>>, vector<1x16x224xf32>
    %10 = vector.shape_cast %9 : vector<1x16x224xf32> to vector<16x224xf32>
    %cst_12 = arith.constant dense<0.000000e+00> : vector<32x224xf32>
    %11 = tpu.matmul %8, %10, %cst_12 {dimension_numbers = #tpu.dot_dimension_numbers<[1], [0], [0], [1], [0, 0, 1, 1], [], []>} : vector<32x16xf32>, vector<16x224xf32>, vector<32x224xf32> -> vector<32x224xf32>
    %12 = arith.addf %5, %11 : vector<32x224xf32>
    %c1 = arith.constant 1 : index
    %c0_13 = arith.constant 0 : index
    %c0_14 = arith.constant 0 : index
    %13 = vector.load %arg1[%c1, %c0_13, %c0_14] : memref<7x32x32xf32, #tpu.memory_space<vmem>>, vector<1x32x32xf32>
    %14 = vector.shape_cast %13 : vector<1x32x32xf32> to vector<32x32xf32>
    %cst_15 = arith.constant dense<0.000000e+00> : vector<32x16xf32>
    %15 = tpu.matmul %14, %4, %cst_15 {dimension_numbers = #tpu.dot_dimension_numbers<[1], [0], [0], [1], [0, 0, 1, 1], [], []>} : vector<32x32xf32>, vector<32x16xf32>, vector<32x16xf32> -> vector<32x16xf32>
    %c1_16 = arith.constant 1 : index
    %c0_17 = arith.constant 0 : index
    %c0_18 = arith.constant 0 : index
    %16 = vector.load %arg2[%c1_16, %c0_17, %c0_18] : memref<7x16x224xf32, #tpu.memory_space<vmem>>, vector<1x16x224xf32>
    %17 = vector.shape_cast %16 : vector<1x16x224xf32> to vector<16x224xf32>
    %cst_19 = arith.constant dense<0.000000e+00> : vector<32x224xf32>
    %18 = tpu.matmul %15, %17, %cst_19 {dimension_numbers = #tpu.dot_dimension_numbers<[1], [0], [0], [1], [0, 0, 1, 1], [], []>} : vector<32x16xf32>, vector<16x224xf32>, vector<32x224xf32> -> vector<32x224xf32>
    %19 = arith.addf %12, %18 : vector<32x224xf32>
    %c2 = arith.constant 2 : index
    %c0_20 = arith.constant 0 : index
    %c0_21 = arith.constant 0 : index
    %20 = vector.load %arg1[%c2, %c0_20, %c0_21] : memref<7x32x32xf32, #tpu.memory_space<vmem>>, vector<1x32x32xf32>
    %21 = vector.shape_cast %20 : vector<1x32x32xf32> to vector<32x32xf32>
    %cst_22 = arith.constant dense<0.000000e+00> : vector<32x16xf32>
    %22 = tpu.matmul %21, %4, %cst_22 {dimension_numbers = #tpu.dot_dimension_numbers<[1], [0], [0], [1], [0, 0, 1, 1], [], []>} : vector<32x32xf32>, vector<32x16xf32>, vector<32x16xf32> -> vector<32x16xf32>
    %c2_23 = arith.constant 2 : index
    %c0_24 = arith.constant 0 : index
    %c0_25 = arith.constant 0 : index
    %23 = vector.load %arg2[%c2_23, %c0_24, %c0_25] : memref<7x16x224xf32, #tpu.memory_space<vmem>>, vector<1x16x224xf32>
    %24 = vector.shape_cast %23 : vector<1x16x224xf32> to vector<16x224xf32>
    %cst_26 = arith.constant dense<0.000000e+00> : vector<32x224xf32>
    %25 = tpu.matmul %22, %24, %cst_26 {dimension_numbers = #tpu.dot_dimension_numbers<[1], [0], [0], [1], [0, 0, 1, 1], [], []>} : vector<32x16xf32>, vector<16x224xf32>, vector<32x224xf32> -> vector<32x224xf32>
    %26 = arith.addf %19, %25 : vector<32x224xf32>
    %c3 = arith.constant 3 : index
    %c0_27 = arith.constant 0 : index
    %c0_28 = arith.constant 0 : index
    %27 = vector.load %arg1[%c3, %c0_27, %c0_28] : memref<7x32x32xf32, #tpu.memory_space<vmem>>, vector<1x32x32xf32>
    %28 = vector.shape_cast %27 : vector<1x32x32xf32> to vector<32x32xf32>
    %cst_29 = arith.constant dense<0.000000e+00> : vector<32x16xf32>
    %29 = tpu.matmul %28, %4, %cst_29 {dimension_numbers = #tpu.dot_dimension_numbers<[1], [0], [0], [1], [0, 0, 1, 1], [], []>} : vector<32x32xf32>, vector<32x16xf32>, vector<32x16xf32> -> vector<32x16xf32>
    %c3_30 = arith.constant 3 : index
    %c0_31 = arith.constant 0 : index
    %c0_32 = arith.constant 0 : index
    %30 = vector.load %arg2[%c3_30, %c0_31, %c0_32] : memref<7x16x224xf32, #tpu.memory_space<vmem>>, vector<1x16x224xf32>
    %31 = vector.shape_cast %30 : vector<1x16x224xf32> to vector<16x224xf32>
    %cst_33 = arith.constant dense<0.000000e+00> : vector<32x224xf32>
    %32 = tpu.matmul %29, %31, %cst_33 {dimension_numbers = #tpu.dot_dimension_numbers<[1], [0], [0], [1], [0, 0, 1, 1], [], []>} : vector<32x16xf32>, vector<16x224xf32>, vector<32x224xf32> -> vector<32x224xf32>
    %33 = arith.addf %26, %32 : vector<32x224xf32>
    %c4 = arith.constant 4 : index
    %c0_34 = arith.constant 0 : index
    %c0_35 = arith.constant 0 : index
    %34 = vector.load %arg1[%c4, %c0_34, %c0_35] : memref<7x32x32xf32, #tpu.memory_space<vmem>>, vector<1x32x32xf32>
    %35 = vector.shape_cast %34 : vector<1x32x32xf32> to vector<32x32xf32>
    %cst_36 = arith.constant dense<0.000000e+00> : vector<32x16xf32>
    %36 = tpu.matmul %35, %4, %cst_36 {dimension_numbers = #tpu.dot_dimension_numbers<[1], [0], [0], [1], [0, 0, 1, 1], [], []>} : vector<32x32xf32>, vector<32x16xf32>, vector<32x16xf32> -> vector<32x16xf32>
    %c4_37 = arith.constant 4 : index
    %c0_38 = arith.constant 0 : index
    %c0_39 = arith.constant 0 : index
    %37 = vector.load %arg2[%c4_37, %c0_38, %c0_39] : memref<7x16x224xf32, #tpu.memory_space<vmem>>, vector<1x16x224xf32>
    %38 = vector.shape_cast %37 : vector<1x16x224xf32> to vector<16x224xf32>
    %cst_40 = arith.constant dense<0.000000e+00> : vector<32x224xf32>
    %39 = tpu.matmul %36, %38, %cst_40 {dimension_numbers = #tpu.dot_dimension_numbers<[1], [0], [0], [1], [0, 0, 1, 1], [], []>} : vector<32x16xf32>, vector<16x224xf32>, vector<32x224xf32> -> vector<32x224xf32>
    %40 = arith.addf %33, %39 : vector<32x224xf32>
    %c5 = arith.constant 5 : index
    %c0_41 = arith.constant 0 : index
    %c0_42 = arith.constant 0 : index
    %41 = vector.load %arg1[%c5, %c0_41, %c0_42] : memref<7x32x32xf32, #tpu.memory_space<vmem>>, vector<1x32x32xf32>
    %42 = vector.shape_cast %41 : vector<1x32x32xf32> to vector<32x32xf32>
    %cst_43 = arith.constant dense<0.000000e+00> : vector<32x16xf32>
    %43 = tpu.matmul %42, %4, %cst_43 {dimension_numbers = #tpu.dot_dimension_numbers<[1], [0], [0], [1], [0, 0, 1, 1], [], []>} : vector<32x32xf32>, vector<32x16xf32>, vector<32x16xf32> -> vector<32x16xf32>
    %c5_44 = arith.constant 5 : index
    %c0_45 = arith.constant 0 : index
    %c0_46 = arith.constant 0 : index
    %44 = vector.load %arg2[%c5_44, %c0_45, %c0_46] : memref<7x16x224xf32, #tpu.memory_space<vmem>>, vector<1x16x224xf32>
    %45 = vector.shape_cast %44 : vector<1x16x224xf32> to vector<16x224xf32>
    %cst_47 = arith.constant dense<0.000000e+00> : vector<32x224xf32>
    %46 = tpu.matmul %43, %45, %cst_47 {dimension_numbers = #tpu.dot_dimension_numbers<[1], [0], [0], [1], [0, 0, 1, 1], [], []>} : vector<32x16xf32>, vector<16x224xf32>, vector<32x224xf32> -> vector<32x224xf32>
    %47 = arith.addf %40, %46 : vector<32x224xf32>
    %c6 = arith.constant 6 : index
    %c0_48 = arith.constant 0 : index
    %c0_49 = arith.constant 0 : index
    %48 = vector.load %arg1[%c6, %c0_48, %c0_49] : memref<7x32x32xf32, #tpu.memory_space<vmem>>, vector<1x32x32xf32>
    %49 = vector.shape_cast %48 : vector<1x32x32xf32> to vector<32x32xf32>
    %cst_50 = arith.constant dense<0.000000e+00> : vector<32x16xf32>
    %50 = tpu.matmul %49, %4, %cst_50 {dimension_numbers = #tpu.dot_dimension_numbers<[1], [0], [0], [1], [0, 0, 1, 1], [], []>} : vector<32x32xf32>, vector<32x16xf32>, vector<32x16xf32> -> vector<32x16xf32>
    %c6_51 = arith.constant 6 : index
    %c0_52 = arith.constant 0 : index
    %c0_53 = arith.constant 0 : index
    %51 = vector.load %arg2[%c6_51, %c0_52, %c0_53] : memref<7x16x224xf32, #tpu.memory_space<vmem>>, vector<1x16x224xf32>
    %52 = vector.shape_cast %51 : vector<1x16x224xf32> to vector<16x224xf32>
    %cst_54 = arith.constant dense<0.000000e+00> : vector<32x224xf32>
    %53 = tpu.matmul %50, %52, %cst_54 {dimension_numbers = #tpu.dot_dimension_numbers<[1], [0], [0], [1], [0, 0, 1, 1], [], []>} : vector<32x16xf32>, vector<16x224xf32>, vector<32x224xf32> -> vector<32x224xf32>
    %54 = arith.addf %47, %53 : vector<32x224xf32>
    %55 = vector.extract_strided_slice %54 {offsets = [0, 0], sizes = [16, 224], strides = [1, 1]} : vector<32x224xf32> to vector<16x224xf32>
    %56 = vector.extract_strided_slice %54 {offsets = [16, 0], sizes = [16, 224], strides = [1, 1]} : vector<32x224xf32> to vector<16x224xf32>
    %57 = arith.subf %55, %56 : vector<16x224xf32>
    %58 = math.absf %57 : vector<16x224xf32>
    %cst_55 = arith.constant 1.000000e+00 : f32
    %59 = vector.broadcast %cst_55 : f32 to vector<16x224xf32>
    %60 = arith.cmpf olt, %58, %59 : vector<16x224xf32>
    %cst_56 = arith.constant 5.000000e-01 : f32
    %61 = vector.broadcast %cst_56 : f32 to vector<16x224xf32>
    %62 = arith.mulf %61, %57 : vector<16x224xf32>
    %63 = arith.mulf %62, %57 : vector<16x224xf32>
    %cst_57 = arith.constant 5.000000e-01 : f32
    %64 = vector.broadcast %cst_57 : f32 to vector<16x224xf32>
    %65 = arith.subf %58, %64 : vector<16x224xf32>
    %66 = arith.select %60, %63, %65 : vector<16x224xi1>, vector<16x224xf32>
    %67 = vector.shape_cast %66 : vector<16x224xf32> to vector<1x16x224xf32>
    %cst_58 = arith.constant dense<0.000000e+00> : vector<1xf32>
    %68 = vector.multi_reduction <add>, %67, %cst_58 [1, 2] : vector<1x16x224xf32> to vector<1xf32>
    %69 = vector.shape_cast %68 : vector<1xf32> to vector<1x1x1xf32>
    %70 = vector.extract %69[0, 0, 0] : f32 from vector<1x1x1xf32>
    %71 = vector.broadcast %70 : f32 to vector<1x1xf32>
    %c0_59 = arith.constant 0 : index
    %c0_60 = arith.constant 0 : index
    %c0_61 = arith.constant 0 : index
    %72 = vector.load %arg5[%c0_59, %c0_60, %c0_61] : memref<1x1x1xf32, #tpu.memory_space<vmem>>, vector<1x1x1xf32>
    %73 = vector.shape_cast %72 : vector<1x1x1xf32> to vector<1x1xf32>
    %74 = vector.shape_cast %71 : vector<1x1xf32> to vector<1x1x1xf32>
    tpu.vector_store %arg5[%c0_59, %c0_60, %c0_61], %74 {strides = array<i32>} : memref<1x1x1xf32, #tpu.memory_space<vmem>>, vector<1x1x1xf32>,
    return
  }
  func.func @transform_0(%arg0: i32) -> (i32, i32, i32) {
    %c0_i32 = arith.constant 0 : i32
    %c0_i32_0 = arith.constant 0 : i32
    %c0_i32_1 = arith.constant 0 : i32
    %c0_i32_2 = arith.constant 0 : i32
    return %c0_i32, %c0_i32_0, %c0_i32_1 : i32, i32, i32
  }
  func.func @transform_1(%arg0: i32) -> (i32, i32, i32) {
    %c0_i32 = arith.constant 0 : i32
    %c0_i32_0 = arith.constant 0 : i32
    %c0_i32_1 = arith.constant 0 : i32
    %c0_i32_2 = arith.constant 0 : i32
    return %c0_i32, %c0_i32_0, %c0_i32_1 : i32, i32, i32
  }
  func.func @transform_2(%arg0: i32) -> (i32, i32, i32) {
    %c0_i32 = arith.constant 0 : i32
    %c0_i32_0 = arith.constant 0 : i32
    %c0_i32_1 = arith.constant 0 : i32
    return %arg0, %c0_i32, %c0_i32_0 : i32, i32, i32
  }
  func.func @transform_3(%arg0: i32) -> (i32, i32, i32) {
    %c0_i32 = arith.constant 0 : i32
    %c0_i32_0 = arith.constant 0 : i32
    %c0_i32_1 = arith.constant 0 : i32
    return %arg0, %c0_i32, %c0_i32_0 : i32, i32, i32
  }
  func.func @transform_4(%arg0: i32) -> (i32, i32, i32) {
    %c0_i32 = arith.constant 0 : i32
    %c0_i32_0 = arith.constant 0 : i32
    %c0_i32_1 = arith.constant 0 : i32
    return %arg0, %c0_i32, %c0_i32_0 : i32, i32, i32
  }
}

</mosaic_0001>

<llo_original>
// kernel: tpu_custom_call.1
$region0: #{tpu_custom_call.1}
  #allocation0 [shape = 'u32[]', space=smem, size = 0x4, offset = 0x4, fixed_abs, tag = 'smem constant byte address 0x4 - core index']
  #allocation1 [shape = 'u32[72,128]{1,0:T(1,128)}', space=vmem, size = 0x9000, scoped, tag = 'internal scratch']
  %s0 = inlined_call_operand.hbm [shape: f32[7,32,32], index: 0, kind: input, shape index: {}]
  %s1 = inlined_call_operand.hbm [shape: f32[7,16,224], index: 1, kind: input, shape index: {}]
  %s2 = inlined_call_operand.hbm [shape: f32[2,16,16], index: 2, kind: input, shape index: {}]
  %s3 = inlined_call_operand.hbm [shape: f32[2,16,16], index: 3, kind: input, shape index: {}]
  %s4 = inlined_call_operand.vmem [shape: f32[2,1,1], index: 4, kind: output, shape index: {}]
  %s5 = sld [smem:[#allocation0]]
  $region65: #{tpu_custom_call.1} parent=0
    _
  %s7 = ssub.s32 1, %s5
  %s8 = scalar_select 0, %s7, %s5
  $region1: #{tpu_custom_call.1} parent=0
    #allocation2 [shape = 'u8[114688]{0}', space=vmem, size = 0x1c000, scoped, tag = 'input window, operand 0, single buffered']
    #allocation3 [shape = 's32[2]{0}', space=sflag, size = 0x8, scoped, tag = 'scoped memory for tpu_custom_call.1']
    #allocation4 [shape = 'u8[114688]{0}', space=vmem, size = 0x1c000, scoped, tag = 'input window, operand 1, single buffered']
    #allocation5 [shape = 's32[1]{0}', space=sflag, size = 0x4, scoped, tag = 'scoped memory for tpu_custom_call.1']
    #allocation6 [shape = 'u8[16384]{0}', space=vmem, size = 0x4000, scoped, tag = 'input window, operand 2']
    #allocation7 [shape = 'u8[16384]{0}', space=vmem, size = 0x4000, scoped, tag = 'input window, operand 3']
    %9 = vsyncpa [#allocation3], 0
    %10 = vsyncpa [#allocation5], 0
    loop: start=0, step=1, limit=4
    $region2: #{tpu_custom_call.1} parent=1 // loop_pre_header
      _
    $region3: #{tpu_custom_call.1} parent=1 // loop_header
      %s12 = sphi 0, %s16
      %p13 = scmp.ge.s32.totalorder %s12, 4
      %s20 = sphi 0, %s20
      %s22 = sphi 0, %s20
      %s23 = sphi 0, %s22
      %s37 = sphi 0, %s23
      %s41 = sphi 0, %s41
      %s43 = sphi 0, %s41
      %s44 = sphi 0, %s43
      %s58 = sphi 0, %s44
      %s64 = sphi 0, %s66
      %s67 = sphi 0, %s64
      %s68 = sphi 0, %s67
      %s84 = sphi 0, %s68
      %s90 = sphi 0, %s92
      %s93 = sphi 0, %s90
      %s94 = sphi 0, %s93
      %s110 = sphi 0, %s94
      %s116 = sphi 0, %s118
      %s119 = sphi 0, %s116
      %s120 = sphi 0, %s119
      %s136 = sphi 0, %s120
    $region4: #{tpu_custom_call.1} parent=1 // loop_header_branch
      %15 = sbr.rel (%p13) target = $region8
    $region5: #{tpu_custom_call.1} parent=1 // loop_body
      %s17 = ssub.s32 %s12, 1
      %s18 = ssub.s32 %s12, 2
      %s19 = sadd.s32 %s12, 1
      %s21 = sadd.s32 %s20, 1
      %p24 = scmp.eq.s32.totalorder %s12, 1
      %p25 = scmp.ne.s32.totalorder %s20, %s22
      %p26 = scmp.eq.s32.totalorder %s12, 0
      %p27 = por %p25, %p26
      %p28 = scmp.ne.s32.totalorder %s20, %s22
      %p29 = scmp.eq.s32.totalorder %s17, 1
      %p30 = por %p28, %p29
      %p31 = scmp.ne.s32.totalorder %s22, %s23
      %p32 = scmp.eq.s32.totalorder %s17, 0
      %p33 = por %p31, %p32
      %p34 = scmp.ne.s32.totalorder %s22, %s23
      %p35 = scmp.eq.s32.totalorder %s18, 1
      %p36 = por %p34, %p35
      %p38 = scmp.ne.s32.totalorder %s23, %s37
      %p39 = scmp.eq.s32.totalorder %s18, 0
      %p40 = por %p38, %p39
      %s42 = sadd.s32 %s41, 1
      %p45 = scmp.eq.s32.totalorder %s12, 1
      %p46 = scmp.ne.s32.totalorder %s41, %s43
      %p47 = scmp.eq.s32.totalorder %s12, 0
      %p48 = por %p46, %p47
      %p49 = scmp.ne.s32.totalorder %s41, %s43
      %p50 = scmp.eq.s32.totalorder %s17, 1
      %p51 = por %p49, %p50
      %p52 = scmp.ne.s32.totalorder %s43, %s44
      %p53 = scmp.eq.s32.totalorder %s17, 0
      %p54 = por %p52, %p53
      %p55 = scmp.ne.s32.totalorder %s43, %s44
      %p56 = scmp.eq.s32.totalorder %s18, 1
      %p57 = por %p55, %p56
      %p59 = scmp.ne.s32.totalorder %s44, %s58
      %p60 = scmp.eq.s32.totalorder %s18, 0
      %p61 = por %p59, %p60
      %s62 = ssub.s32 %s12, %s19
      %p63 = scmp.eq.s32.totalorder %s62, 0
      %s65 = sadd.s32 %s64, 1
      %s66 = scalar_select %p63, %s64, %s65
      %p69 = pneg %p63
      %p70 = scmp.eq.s32.totalorder %s12, 1
      %p71 = por %p69, %p70
      %p72 = scmp.ne.s32.totalorder %s64, %s67
      %p73 = scmp.eq.s32.totalorder %s12, 0
      %p74 = por %p72, %p73
      %p75 = scmp.ne.s32.totalorder %s64, %s67
      %p76 = scmp.eq.s32.totalorder %s17, 1
      %p77 = por %p75, %p76
      %p78 = scmp.ne.s32.totalorder %s67, %s68
      %p79 = scmp.eq.s32.totalorder %s17, 0
      %p80 = por %p78, %p79
      %p81 = scmp.ne.s32.totalorder %s67, %s68
      %p82 = scmp.eq.s32.totalorder %s18, 1
      %p83 = por %p81, %p82
      %p85 = scmp.ne.s32.totalorder %s68, %s84
      %p86 = scmp.eq.s32.totalorder %s18, 0
      %p87 = por %p85, %p86
      %s88 = ssub.s32 %s12, %s19
      %p89 = scmp.eq.s32.totalorder %s88, 0
      %s91 = sadd.s32 %s90, 1
      %s92 = scalar_select %p89, %s90, %s91
      %p95 = pneg %p89
      %p96 = scmp.eq.s32.totalorder %s12, 1
      %p97 = por %p95, %p96
      %p98 = scmp.ne.s32.totalorder %s90, %s93
      %p99 = scmp.eq.s32.totalorder %s12, 0
      %p100 = por %p98, %p99
      %p101 = scmp.ne.s32.totalorder %s90, %s93
      %p102 = scmp.eq.s32.totalorder %s17, 1
      %p103 = por %p101, %p102
      %p104 = scmp.ne.s32.totalorder %s93, %s94
      %p105 = scmp.eq.s32.totalorder %s17, 0
      %p106 = por %p104, %p105
      %p107 = scmp.ne.s32.totalorder %s93, %s94
      %p108 = scmp.eq.s32.totalorder %s18, 1
      %p109 = por %p107, %p108
      %p111 = scmp.ne.s32.totalorder %s94, %s110
      %p112 = scmp.eq.s32.totalorder %s18, 0
      %p113 = por %p111, %p112
      %s114 = ssub.s32 %s12, %s19
      %p115 = scmp.eq.s32.totalorder %s114, 0
      %s117 = sadd.s32 %s116, 1
      %s118 = scalar_select %p115, %s116, %s117
      %p121 = pneg %p115
      %p122 = scmp.eq.s32.totalorder %s12, 1
      %p123 = por %p121, %p122
      %p124 = scmp.ne.s32.totalorder %s116, %s119
      %p125 = scmp.eq.s32.totalorder %s12, 0
      %p126 = por %p124, %p125
      %p127 = scmp.ne.s32.totalorder %s116, %s119
      %p128 = scmp.eq.s32.totalorder %s17, 1
      %p129 = por %p127, %p128
      %p130 = scmp.ne.s32.totalorder %s119, %s120
      %p131 = scmp.eq.s32.totalorder %s17, 0
      %p132 = por %p130, %p131
      %p133 = scmp.ne.s32.totalorder %s119, %s120
      %p134 = scmp.eq.s32.totalorder %s18, 1
      %p135 = por %p133, %p134
      %p137 = scmp.ne.s32.totalorder %s120, %s136
      %p138 = scmp.eq.s32.totalorder %s18, 0
      %p139 = por %p137, %p138
      %p140 = scmp.le.s32.totalorder 1, %s12
      %p141 = scmp.lt.s32.totalorder %s12, 3
      %p142 = pnand %p140, %p141
      %p143 = pneg %p142
      // Predicated region
      $region9: #{tpu_custom_call.1} parent=5 // pred_check
        _
      $region10: #{tpu_custom_call.1} parent=5 // pred_check_branch
        %145 = sbr.rel (%p142) target = $region12
      $region11: #{tpu_custom_call.1} parent=5 // pred_region
        %s146 = ssub.s32 %s12, 1
        // Predicated region
        $region13: #{tpu_custom_call.1} parent=11 // pred_check
          %p147 = pneg %p33
        $region14: #{tpu_custom_call.1} parent=11 // pred_check_branch
          %149 = sbr.rel (%p147) target = $region16
        $region15: #{tpu_custom_call.1} parent=11 // pred_region
          %151 = vsyncadd [#allocation3], 0
          %s152 = sshll.u32 %s0, 4
          %s153 = int_to_ptr.hbm [resolvable:$true] %s152
          %s154 = sshll.u32 [#allocation2], 4
          %s155 = int_to_ptr.vmem [resolvable:$true] %s154
          %160 = dma.hbm_to_vmem [thread:$0]  %s153, 3584, %s155, [#allocation3], 128, 128, 8
        $region16: #{tpu_custom_call.1} parent=11 // pred_fallthru
          _
        // Predicated region
        $region17: #{tpu_custom_call.1} parent=11 // pred_check
          %p161 = pneg %p54
        $region18: #{tpu_custom_call.1} parent=11 // pred_check_branch
          %163 = sbr.rel (%p161) target = $region20
        $region19: #{tpu_custom_call.1} parent=11 // pred_region
          %165 = vsyncadd [#allocation5], 0
          %s166 = sshll.u32 %s1, 4
          %s167 = int_to_ptr.hbm [resolvable:$true] %s166
          %s168 = sshll.u32 [#allocation4], 4
          %s169 = int_to_ptr.vmem [resolvable:$true] %s168
          %174 = dma.hbm_to_vmem [thread:$0]  %s167, 3584, %s169, [#allocation5], 256, 256, 16
        $region20: #{tpu_custom_call.1} parent=11 // pred_fallthru
          _
      $region12: #{tpu_custom_call.1} parent=5 // pred_fallthru
        _
      %p175 = scmp.lt.s32.totalorder %s12, 2
      // Predicated region
      $region21: #{tpu_custom_call.1} parent=5 // pred_check
        %p176 = pneg %p175
      $region22: #{tpu_custom_call.1} parent=5 // pred_check_branch
        %178 = sbr.rel (%p176) target = $region24
      $region23: #{tpu_custom_call.1} parent=5 // pred_region
        // Predicated region
        $region25: #{tpu_custom_call.1} parent=23 // pred_check
          %p179 = pneg %p74
        $region26: #{tpu_custom_call.1} parent=23 // pred_check_branch
          %181 = sbr.rel (%p179) target = $region28
        $region27: #{tpu_custom_call.1} parent=23 // pred_region
          %s182 = sand.u32 %s12, 1
          %s183 = scalar_lea.sflag [#allocation3], %s182
          %s184 = sand.u32 %s64, 1
          %s185 = smul.addr %s184, 16
          %s186 = scalar_lea.vmem [#allocation6], %s185
          %188 = vsyncadd %s183, 0
          %s189 = smul.addr %s12, 2
          %s190 = smul.addr %s189, 8
          %s191 = scalar_lea.hbm %s2, %s190
          %s192 = sshll.u32 %s191, 4
          %s193 = int_to_ptr.hbm [resolvable:$true] %s192
          %s194 = sshll.u32 %s186, 4
          %s195 = int_to_ptr.vmem [resolvable:$true] %s194
          %200 = dma.hbm_to_vmem [thread:$0]  %s193, 256, %s195, %s183, 128, 128, 8
        $region28: #{tpu_custom_call.1} parent=23 // pred_fallthru
          _
        // Predicated region
        $region29: #{tpu_custom_call.1} parent=23 // pred_check
          %p201 = pneg %p100
        $region30: #{tpu_custom_call.1} parent=23 // pred_check_branch
          %203 = sbr.rel (%p201) target = $region32
        $region31: #{tpu_custom_call.1} parent=23 // pred_region
          %s204 = sand.u32 %s12, 1
          %s205 = scalar_lea.sflag [#allocation3], %s204
          %s206 = sand.u32 %s90, 1
          %s207 = smul.addr %s206, 16
          %s208 = scalar_lea.vmem [#allocation7], %s207
          %210 = vsyncadd %s205, 0
          %s211 = smul.addr %s12, 2
          %s212 = smul.addr %s211, 8
          %s213 = scalar_lea.hbm %s3, %s212
          %s214 = sshll.u32 %s213, 4
          %s215 = int_to_ptr.hbm [resolvable:$true] %s214
          %s216 = sshll.u32 %s208, 4
          %s217 = int_to_ptr.vmem [resolvable:$true] %s216
          %222 = dma.hbm_to_vmem [thread:$0]  %s215, 256, %s217, %s205, 128, 128, 8
        $region32: #{tpu_custom_call.1} parent=23 // pred_fallthru
          _
      $region24: #{tpu_custom_call.1} parent=5 // pred_fallthru
        _
      %p223 = scmp.le.s32.totalorder 1, %s12
      %p224 = scmp.lt.s32.totalorder %s12, 3
      %p225 = pnand %p223, %p224
      %p226 = pneg %p225
      // Predicated region
      $region33: #{tpu_custom_call.1} parent=5 // pred_check
        _
      $region34: #{tpu_custom_call.1} parent=5 // pred_check_branch
        %228 = sbr.rel (%p225) target = $region36
      $region35: #{tpu_custom_call.1} parent=5 // pred_region
        %s229 = ssub.s32 %s12, 1
        // Predicated region
        $region37: #{tpu_custom_call.1} parent=35 // pred_check
          %p230 = pneg %p33
        $region38: #{tpu_custom_call.1} parent=35 // pred_check_branch
          %232 = sbr.rel (%p230) target = $region40
        $region39: #{tpu_custom_call.1} parent=35 // pred_region
          %234 = dma.done [#allocation3], 3584
        $region40: #{tpu_custom_call.1} parent=35 // pred_fallthru
          _
        // Predicated region
        $region41: #{tpu_custom_call.1} parent=35 // pred_check
          %p235 = pneg %p54
        $region42: #{tpu_custom_call.1} parent=35 // pred_check_branch
          %237 = sbr.rel (%p235) target = $region44
        $region43: #{tpu_custom_call.1} parent=35 // pred_region
          %239 = dma.done [#allocation5], 3584
        $region44: #{tpu_custom_call.1} parent=35 // pred_fallthru
          _
        %s240 = sand.u32 %s17, 1
        %s241 = scalar_lea.sflag [#allocation3], %s240
        %s242 = sand.u32 %s67, 1
        %s243 = smul.addr %s242, 16
        %s244 = scalar_lea.vmem [#allocation6], %s243
        // Predicated region
        $region45: #{tpu_custom_call.1} parent=35 // pred_check
          %p245 = pneg %p80
        $region46: #{tpu_custom_call.1} parent=35 // pred_check_branch
          %247 = sbr.rel (%p245) target = $region48
        $region47: #{tpu_custom_call.1} parent=35 // pred_region
          %249 = dma.done %s241, 256
        $region48: #{tpu_custom_call.1} parent=35 // pred_fallthru
          _
        %s250 = sand.u32 %s17, 1
        %s251 = scalar_lea.sflag [#allocation3], %s250
        %s252 = sand.u32 %s93, 1
        %s253 = smul.addr %s252, 16
        %s254 = scalar_lea.vmem [#allocation7], %s253
        // Predicated region
        $region49: #{tpu_custom_call.1} parent=35 // pred_check
          %p255 = pneg %p106
        $region50: #{tpu_custom_call.1} parent=35 // pred_check_branch
          %257 = sbr.rel (%p255) target = $region52
        $region51: #{tpu_custom_call.1} parent=35 // pred_region
          %259 = dma.done %s251, 256
        $region52: #{tpu_custom_call.1} parent=35 // pred_fallthru
          _
        %p260 = pneg %p33
        %p261 = pneg %p30
        %p262 = pneg %p54
        %p263 = pneg %p51
        %s264 = sand.u32 %s17, 1
        %s265 = scalar_lea.sflag [#allocation3], %s264
        %s266 = sand.u32 %s67, 1
        %s267 = smul.addr %s266, 16
        %s268 = scalar_lea.vmem [#allocation6], %s267
        %p269 = pneg %p80
        %p270 = pneg %p77
        %s271 = sand.u32 %s17, 1
        %s272 = scalar_lea.sflag [#allocation3], %s271
        %s273 = sand.u32 %s93, 1
        %s274 = smul.addr %s273, 16
        %s275 = scalar_lea.vmem [#allocation7], %s274
        %p276 = pneg %p106
        %p277 = pneg %p103
        %p278 = pneg %p132
        %p279 = pneg %p129
        %p280 = scmp.lt.s32.totalorder %s17, 1
        %s281 = scalar_select %p280, %s17, 1
        %s282 = scalar_lea.vmem %s4, %s281
        %p283 = scmp.lt.s32.totalorder %s17, 1
        %s284 = scalar_select %p283, %s17, 1
        %s285 = scalar_lea.vmem %s4, %s284
        %v286 = vld [vmem:[%s244] sm:$0xff]
        %v287 = vld [vmem:[%s244 + $0x8] sm:$0xff]
        %v288 = vld [vmem:[%s254] sm:$0xff]
        %v289 = vld [vmem:[%s254 + $0x8] sm:$0xff]
        %v290 = vld [vmem:[#allocation2] sm:$0xff]
        %v291 = vld [vmem:[#allocation2 + $0x8] sm:$0xff]
        %v292 = vld [vmem:[#allocation2 + $0x10] sm:$0xff]
        %v293 = vld [vmem:[#allocation2 + $0x18] sm:$0xff]
        %vm294 = vcmask 261120
        %v296 = vsel %vm294, %v290, 0
        %v299 = vsel %vm294, %v291, 0
        %v302 = vsel %vm294, %v292, 0
        %v305 = vsel %vm294, %v293, 0
        %307 = vmatpush.msra.mxu0 0.0
        %308 = vmatpush.msra.mxu0 0.0
        %309 = vmatpush.msra.mxu0 0.0
        %310 = vmatpush.msra.mxu0 0.0
        %311 = vmatpush.msra.mxu0 0.0
        %312 = vmatpush.msra.mxu0 0.0
        %313 = vmatpush.msra.mxu0 0.0
        %314 = vmatpush.msra.mxu0 0.0
        %315 = vmatpush.msra.mxu0 0.0
        %316 = vmatpush.msra.mxu0 0.0
        %317 = vmatpush.msra.mxu0 0.0
        %318 = vmatpush.msra.mxu0 0.0
        %319 = vmatpush.msra.mxu0 %v289
        %320 = vmatpush.msra.mxu0 %v288
        %321 = vmatpush.msra.mxu0 %v287
        %322 = vmatpush.msra.mxu0 %v286
        %323 = vmatmul.f32.gmra.mxu0 %v296
        %v324 = vpop.f32.mrf.mxu0
        %v325 = vadd.f32 0.0, %v324
        %326 = vmatmul.f32.gmra.mxu0 %v299
        %v327 = vpop.f32.mrf.mxu0
        %v328 = vadd.f32 0.0, %v327
        %329 = vmatmul.f32.gmra.mxu0 %v302
        %v330 = vpop.f32.mrf.mxu0
        %v331 = vadd.f32 0.0, %v330
        %332 = vmatmul.f32.gmra.mxu0 %v305
        %v333 = vpop.f32.mrf.mxu0
        %v334 = vadd.f32 0.0, %v333
        %335 = vdwg.mxu0
        %v336 = vld [vmem:[#allocation4] sm:$0xff]
        %v337 = vld [vmem:[#allocation4 + $0x8] sm:$0xff]
        %v338 = vld [vmem:[#allocation4 + $0x10] sm:$0xff]
        %v339 = vld [vmem:[#allocation4 + $0x18] sm:$0xff]
        %s340 = scalar_lea.vmem [#allocation2], 32
        %v341 = vld [vmem:[%s340] sm:$0xff]
        %v342 = vld [vmem:[%s340 + $0x8] sm:$0xff]
        %v343 = vld [vmem:[%s340 + $0x10] sm:$0xff]
        %v344 = vld [vmem:[%s340 + $0x18] sm:$0xff]
        %v346 = vsel %vm294, %v341, 0
        %v349 = vsel %vm294, %v342, 0
        %v352 = vsel %vm294, %v343, 0
        %v355 = vsel %vm294, %v344, 0
        %357 = vmatpush.msra.mxu0 0.0
        %358 = vmatpush.msra.mxu0 0.0
        %359 = vmatpush.msra.mxu0 0.0
        %360 = vmatpush.msra.mxu0 0.0
        %361 = vmatpush.msra.mxu0 0.0
        %362 = vmatpush.msra.mxu0 0.0
        %363 = vmatpush.msra.mxu0 0.0
        %364 = vmatpush.msra.mxu0 0.0
        %365 = vmatpush.msra.mxu0 0.0
        %366 = vmatpush.msra.mxu0 0.0
        %367 = vmatpush.msra.mxu0 0.0
        %368 = vmatpush.msra.mxu0 0.0
        %369 = vmatpush.msra.mxu0 %v289
        %370 = vmatpush.msra.mxu0 %v288
        %371 = vmatpush.msra.mxu0 %v287
        %372 = vmatpush.msra.mxu0 %v286
        %373 = vmatmul.f32.gmra.mxu0 %v346
        %v374 = vpop.f32.mrf.mxu0
        %v375 = vadd.f32 0.0, %v374
        %376 = vmatmul.f32.gmra.mxu0 %v349
        %v377 = vpop.f32.mrf.mxu0
        %v378 = vadd.f32 0.0, %v377
        %379 = vmatmul.f32.gmra.mxu0 %v352
        %v380 = vpop.f32.mrf.mxu0
        %v381 = vadd.f32 0.0, %v380
        %382 = vmatmul.f32.gmra.mxu0 %v355
        %v383 = vpop.f32.mrf.mxu0
        %v384 = vadd.f32 0.0, %v383
        %385 = vdwg.mxu0
        %s386 = scalar_lea.vmem [#allocation4], 32
        %v387 = vld [vmem:[%s386] sm:$0xff]
        %v388 = vld [vmem:[%s386 + $0x8] sm:$0xff]
        %v389 = vld [vmem:[%s386 + $0x10] sm:$0xff]
        %v390 = vld [vmem:[%s386 + $0x18] sm:$0xff]
        %vm391 = vcmask 130048
        %v393 = vsel %vm391, %v375, 0
        %v396 = vsel %vm391, %v378, 0
        %v399 = vsel %vm391, %v381, 0
        %v402 = vsel %vm391, %v384, 0
        %404 = vmatpush.msra.mxu0 0.0
        %405 = vmatpush.msra.mxu0 0.0
        %406 = vmatpush.msra.mxu0 0.0
        %407 = vmatpush.msra.mxu0 0.0
        %408 = vmatpush.msra.mxu0 0.0
        %409 = vmatpush.msra.mxu0 0.0
        %410 = vmatpush.msra.mxu0 0.0
        %411 = vmatpush.msra.mxu0 0.0
        %412 = vmatpush.msra.mxu0 0.0
        %413 = vmatpush.msra.mxu0 0.0
        %414 = vmatpush.msra.mxu0 0.0
        %415 = vmatpush.msra.mxu0 0.0
        %416 = vmatpush.msra.mxu0 0.0
        %417 = vmatpush.msra.mxu0 0.0
        %418 = vmatpush.msra.mxu0 %v389
        %419 = vmatpush.msra.mxu0 %v387
        %420 = vmatmul.f32.gmra.mxu0 %v393
        %v421 = vpop.f32.mrf.mxu0
        %v422 = vadd.f32 0.0, %v421
        %423 = vmatmul.f32.gmra.mxu0 %v396
        %v424 = vpop.f32.mrf.mxu0
        %v425 = vadd.f32 0.0, %v424
        %426 = vmatmul.f32.gmra.mxu0 %v399
        %v427 = vpop.f32.mrf.mxu0
        %v428 = vadd.f32 0.0, %v427
        %429 = vmatmul.f32.gmra.mxu0 %v402
        %v430 = vpop.f32.mrf.mxu0
        %v431 = vadd.f32 0.0, %v430
        %432 = vdwg.mxu0
        %433 = vmatpush.msra.mxu0 0.0
        %434 = vmatpush.msra.mxu0 0.0
        %435 = vmatpush.msra.mxu0 0.0
        %436 = vmatpush.msra.mxu0 0.0
        %437 = vmatpush.msra.mxu0 0.0
        %438 = vmatpush.msra.mxu0 0.0
        %439 = vmatpush.msra.mxu0 0.0
        %440 = vmatpush.msra.mxu0 0.0
        %441 = vmatpush.msra.mxu0 0.0
        %442 = vmatpush.msra.mxu0 0.0
        %443 = vmatpush.msra.mxu0 0.0
        %444 = vmatpush.msra.mxu0 0.0
        %445 = vmatpush.msra.mxu0 0.0
        %446 = vmatpush.msra.mxu0 0.0
        %447 = vmatpush.msra.mxu0 %v390
        %448 = vmatpush.msra.mxu0 %v388
        %449 = vmatmul.f32.gmra.mxu0 %v393
        %v450 = vpop.f32.mrf.mxu0
        %v451 = vadd.f32 0.0, %v450
        %452 = vmatmul.f32.gmra.mxu0 %v396
        %v453 = vpop.f32.mrf.mxu0
        %v454 = vadd.f32 0.0, %v453
        %455 = vmatmul.f32.gmra.mxu0 %v399
        %v456 = vpop.f32.mrf.mxu0
        %v457 = vadd.f32 0.0, %v456
        %458 = vmatmul.f32.gmra.mxu0 %v402
        %v459 = vpop.f32.mrf.mxu0
        %v460 = vadd.f32 0.0, %v459
        %461 = vdwg.mxu0
        %v463 = vsel %vm391, %v325, 0
        %v466 = vsel %vm391, %v328, 0
        %v469 = vsel %vm391, %v331, 0
        %v472 = vsel %vm391, %v334, 0
        %474 = vmatpush.msra.mxu0 0.0
        %475 = vmatpush.msra.mxu0 0.0
        %476 = vmatpush.msra.mxu0 0.0
        %477 = vmatpush.msra.mxu0 0.0
        %478 = vmatpush.msra.mxu0 0.0
        %479 = vmatpush.msra.mxu0 0.0
        %480 = vmatpush.msra.mxu0 0.0
        %481 = vmatpush.msra.mxu0 0.0
        %482 = vmatpush.msra.mxu0 0.0
        %483 = vmatpush.msra.mxu0 0.0
        %484 = vmatpush.msra.mxu0 0.0
        %485 = vmatpush.msra.mxu0 0.0
        %486 = vmatpush.msra.mxu0 0.0
        %487 = vmatpush.msra.mxu0 0.0
        %488 = vmatpush.msra.mxu0 %v338
        %489 = vmatpush.msra.mxu0 %v336
        %490 = vmatmul.f32.gmra.mxu0 %v463
        %v491 = vpop.f32.mrf.mxu0
        %v492 = vadd.f32 %v422, %v491
        %493 = vmatmul.f32.gmra.mxu0 %v466
        %v494 = vpop.f32.mrf.mxu0
        %v495 = vadd.f32 %v425, %v494
        %496 = vmatmul.f32.gmra.mxu0 %v469
        %v497 = vpop.f32.mrf.mxu0
        %v498 = vadd.f32 %v428, %v497
        %499 = vmatmul.f32.gmra.mxu0 %v472
        %v500 = vpop.f32.mrf.mxu0
        %v501 = vadd.f32 %v431, %v500
        %502 = vdwg.mxu0
        %503 = vmatpush.msra.mxu0 0.0
        %504 = vmatpush.msra.mxu0 0.0
        %505 = vmatpush.msra.mxu0 0.0
        %506 = vmatpush.msra.mxu0 0.0
        %507 = vmatpush.msra.mxu0 0.0
        %508 = vmatpush.msra.mxu0 0.0
        %509 = vmatpush.msra.mxu0 0.0
        %510 = vmatpush.msra.mxu0 0.0
        %511 = vmatpush.msra.mxu0 0.0
        %512 = vmatpush.msra.mxu0 0.0
        %513 = vmatpush.msra.mxu0 0.0
        %514 = vmatpush.msra.mxu0 0.0
        %515 = vmatpush.msra.mxu0 0.0
        %516 = vmatpush.msra.mxu0 0.0
        %517 = vmatpush.msra.mxu0 %v339
        %518 = vmatpush.msra.mxu0 %v337
        %519 = vmatmul.f32.gmra.mxu0 %v463
        %v520 = vpop.f32.mrf.mxu0
        %v521 = vadd.f32 %v451, %v520
        %522 = vmatmul.f32.gmra.mxu0 %v466
        %v523 = vpop.f32.mrf.mxu0
        %v524 = vadd.f32 %v454, %v523
        %525 = vmatmul.f32.gmra.mxu0 %v469
        %v526 = vpop.f32.mrf.mxu0
        %v527 = vadd.f32 %v457, %v526
        %528 = vmatmul.f32.gmra.mxu0 %v472
        %v529 = vpop.f32.mrf.mxu0
        %v530 = vadd.f32 %v460, %v529
        %531 = vdwg.mxu0
        %s532 = scalar_lea.vmem [#allocation2], 64
        %v533 = vld [vmem:[%s532] sm:$0xff]
        %v534 = vld [vmem:[%s532 + $0x8] sm:$0xff]
        %v535 = vld [vmem:[%s532 + $0x10] sm:$0xff]
        %v536 = vld [vmem:[%s532 + $0x18] sm:$0xff]
        %v538 = vsel %vm294, %v533, 0
        %v541 = vsel %vm294, %v534, 0
        %v544 = vsel %vm294, %v535, 0
        %v547 = vsel %vm294, %v536, 0
        %549 = vmatpush.msra.mxu0 0.0
        %550 = vmatpush.msra.mxu0 0.0
        %551 = vmatpush.msra.mxu0 0.0
        %552 = vmatpush.msra.mxu0 0.0
        %553 = vmatpush.msra.mxu0 0.0
        %554 = vmatpush.msra.mxu0 0.0
        %555 = vmatpush.msra.mxu0 0.0
        %556 = vmatpush.msra.mxu0 0.0
        %557 = vmatpush.msra.mxu0 0.0
        %558 = vmatpush.msra.mxu0 0.0
        %559 = vmatpush.msra.mxu0 0.0
        %560 = vmatpush.msra.mxu0 0.0
        %561 = vmatpush.msra.mxu0 %v289
        %562 = vmatpush.msra.mxu0 %v288
        %563 = vmatpush.msra.mxu0 %v287
        %564 = vmatpush.msra.mxu0 %v286
        %565 = vmatmul.f32.gmra.mxu0 %v538
        %v566 = vpop.f32.mrf.mxu0
        %v567 = vadd.f32 0.0, %v566
        %568 = vmatmul.f32.gmra.mxu0 %v541
        %v569 = vpop.f32.mrf.mxu0
        %v570 = vadd.f32 0.0, %v569
        %571 = vmatmul.f32.gmra.mxu0 %v544
        %v572 = vpop.f32.mrf.mxu0
        %v573 = vadd.f32 0.0, %v572
        %574 = vmatmul.f32.gmra.mxu0 %v547
        %v575 = vpop.f32.mrf.mxu0
        %v576 = vadd.f32 0.0, %v575
        %577 = vdwg.mxu0
        %s578 = scalar_lea.vmem [#allocation4], 64
        %v579 = vld [vmem:[%s578] sm:$0xff]
        %v580 = vld [vmem:[%s578 + $0x8] sm:$0xff]
        %v581 = vld [vmem:[%s578 + $0x10] sm:$0xff]
        %v582 = vld [vmem:[%s578 + $0x18] sm:$0xff]
        %v584 = vsel %vm391, %v567, 0
        %v587 = vsel %vm391, %v570, 0
        %v590 = vsel %vm391, %v573, 0
        %v593 = vsel %vm391, %v576, 0
        %595 = vmatpush.msra.mxu0 0.0
        %596 = vmatpush.msra.mxu0 0.0
        %597 = vmatpush.msra.mxu0 0.0
        %598 = vmatpush.msra.mxu0 0.0
        %599 = vmatpush.msra.mxu0 0.0
        %600 = vmatpush.msra.mxu0 0.0
        %601 = vmatpush.msra.mxu0 0.0
        %602 = vmatpush.msra.mxu0 0.0
        %603 = vmatpush.msra.mxu0 0.0
        %604 = vmatpush.msra.mxu0 0.0
        %605 = vmatpush.msra.mxu0 0.0
        %606 = vmatpush.msra.mxu0 0.0
        %607 = vmatpush.msra.mxu0 0.0
        %608 = vmatpush.msra.mxu0 0.0
        %609 = vmatpush.msra.mxu0 %v581
        %610 = vmatpush.msra.mxu0 %v579
        %611 = vmatmul.f32.gmra.mxu0 %v584
        %v612 = vpop.f32.mrf.mxu0
        %v613 = vadd.f32 0.0, %v612
        %614 = vmatmul.f32.gmra.mxu0 %v587
        %v615 = vpop.f32.mrf.mxu0
        %v616 = vadd.f32 0.0, %v615
        %617 = vmatmul.f32.gmra.mxu0 %v590
        %v618 = vpop.f32.mrf.mxu0
        %v619 = vadd.f32 0.0, %v618
        %620 = vmatmul.f32.gmra.mxu0 %v593
        %v621 = vpop.f32.mrf.mxu0
        %v622 = vadd.f32 0.0, %v621
        %623 = vdwg.mxu0
        %624 = vmatpush.msra.mxu0 0.0
        %625 = vmatpush.msra.mxu0 0.0
        %626 = vmatpush.msra.mxu0 0.0
        %627 = vmatpush.msra.mxu0 0.0
        %628 = vmatpush.msra.mxu0 0.0
        %629 = vmatpush.msra.mxu0 0.0
        %630 = vmatpush.msra.mxu0 0.0
        %631 = vmatpush.msra.mxu0 0.0
        %632 = vmatpush.msra.mxu0 0.0
        %633 = vmatpush.msra.mxu0 0.0
        %634 = vmatpush.msra.mxu0 0.0
        %635 = vmatpush.msra.mxu0 0.0
        %636 = vmatpush.msra.mxu0 0.0
        %637 = vmatpush.msra.mxu0 0.0
        %638 = vmatpush.msra.mxu0 %v582
        %639 = vmatpush.msra.mxu0 %v580
        %640 = vmatmul.f32.gmra.mxu0 %v584
        %v641 = vpop.f32.mrf.mxu0
        %v642 = vadd.f32 0.0, %v641
        %643 = vmatmul.f32.gmra.mxu0 %v587
        %v644 = vpop.f32.mrf.mxu0
        %v645 = vadd.f32 0.0, %v644
        %646 = vmatmul.f32.gmra.mxu0 %v590
        %v647 = vpop.f32.mrf.mxu0
        %v648 = vadd.f32 0.0, %v647
        %649 = vmatmul.f32.gmra.mxu0 %v593
        %v650 = vpop.f32.mrf.mxu0
        %v651 = vadd.f32 0.0, %v650
        %652 = vdwg.mxu0
        %v653 = vadd.f32 %v492, %v613
        %v654 = vadd.f32 %v521, %v642
        %v655 = vadd.f32 %v495, %v616
        %v656 = vadd.f32 %v524, %v645
        %v657 = vadd.f32 %v498, %v619
        %v658 = vadd.f32 %v527, %v648
        %v659 = vadd.f32 %v501, %v622
        %v660 = vadd.f32 %v530, %v651
        %s661 = scalar_lea.vmem [#allocation2], 96
        %v662 = vld [vmem:[%s661] sm:$0xff]
        %v663 = vld [vmem:[%s661 + $0x8] sm:$0xff]
        %v664 = vld [vmem:[%s661 + $0x10] sm:$0xff]
        %v665 = vld [vmem:[%s661 + $0x18] sm:$0xff]
        %v667 = vsel %vm294, %v662, 0
        %v670 = vsel %vm294, %v663, 0
        %v673 = vsel %vm294, %v664, 0
        %v676 = vsel %vm294, %v665, 0
        %678 = vmatpush.msra.mxu0 0.0
        %679 = vmatpush.msra.mxu0 0.0
        %680 = vmatpush.msra.mxu0 0.0
        %681 = vmatpush.msra.mxu0 0.0
        %682 = vmatpush.msra.mxu0 0.0
        %683 = vmatpush.msra.mxu0 0.0
        %684 = vmatpush.msra.mxu0 0.0
        %685 = vmatpush.msra.mxu0 0.0
        %686 = vmatpush.msra.mxu0 0.0
        %687 = vmatpush.msra.mxu0 0.0
        %688 = vmatpush.msra.mxu0 0.0
        %689 = vmatpush.msra.mxu0 0.0
        %690 = vmatpush.msra.mxu0 %v289
        %691 = vmatpush.msra.mxu0 %v288
        %692 = vmatpush.msra.mxu0 %v287
        %693 = vmatpush.msra.mxu0 %v286
        %694 = vmatmul.f32.gmra.mxu0 %v667
        %v695 = vpop.f32.mrf.mxu0
        %v696 = vadd.f32 0.0, %v695
        %697 = vmatmul.f32.gmra.mxu0 %v670
        %v698 = vpop.f32.mrf.mxu0
        %v699 = vadd.f32 0.0, %v698
        %700 = vmatmul.f32.gmra.mxu0 %v673
        %v701 = vpop.f32.mrf.mxu0
        %v702 = vadd.f32 0.0, %v701
        %703 = vmatmul.f32.gmra.mxu0 %v676
        %v704 = vpop.f32.mrf.mxu0
        %v705 = vadd.f32 0.0, %v704
        %706 = vdwg.mxu0
        %s707 = scalar_lea.vmem [#allocation4], 96
        %v708 = vld [vmem:[%s707] sm:$0xff]
        %v709 = vld [vmem:[%s707 + $0x8] sm:$0xff]
        %v710 = vld [vmem:[%s707 + $0x10] sm:$0xff]
        %v711 = vld [vmem:[%s707 + $0x18] sm:$0xff]
        %v713 = vsel %vm391, %v696, 0
        %v716 = vsel %vm391, %v699, 0
        %v719 = vsel %vm391, %v702, 0
        %v722 = vsel %vm391, %v705, 0
        %724 = vmatpush.msra.mxu0 0.0
        %725 = vmatpush.msra.mxu0 0.0
        %726 = vmatpush.msra.mxu0 0.0
        %727 = vmatpush.msra.mxu0 0.0
        %728 = vmatpush.msra.mxu0 0.0
        %729 = vmatpush.msra.mxu0 0.0
        %730 = vmatpush.msra.mxu0 0.0
        %731 = vmatpush.msra.mxu0 0.0
        %732 = vmatpush.msra.mxu0 0.0
        %733 = vmatpush.msra.mxu0 0.0
        %734 = vmatpush.msra.mxu0 0.0
        %735 = vmatpush.msra.mxu0 0.0
        %736 = vmatpush.msra.mxu0 0.0
        %737 = vmatpush.msra.mxu0 0.0
        %738 = vmatpush.msra.mxu0 %v710
        %739 = vmatpush.msra.mxu0 %v708
        %740 = vmatmul.f32.gmra.mxu0 %v713
        %v741 = vpop.f32.mrf.mxu0
        %v742 = vadd.f32 0.0, %v741
        %743 = vmatmul.f32.gmra.mxu0 %v716
        %v744 = vpop.f32.mrf.mxu0
        %v745 = vadd.f32 0.0, %v744
        %746 = vmatmul.f32.gmra.mxu0 %v719
        %v747 = vpop.f32.mrf.mxu0
        %v748 = vadd.f32 0.0, %v747
        %749 = vmatmul.f32.gmra.mxu0 %v722
        %v750 = vpop.f32.mrf.mxu0
        %v751 = vadd.f32 0.0, %v750
        %752 = vdwg.mxu0
        %753 = vmatpush.msra.mxu0 0.0
        %754 = vmatpush.msra.mxu0 0.0
        %755 = vmatpush.msra.mxu0 0.0
        %756 = vmatpush.msra.mxu0 0.0
        %757 = vmatpush.msra.mxu0 0.0
        %758 = vmatpush.msra.mxu0 0.0
        %759 = vmatpush.msra.mxu0 0.0
        %760 = vmatpush.msra.mxu0 0.0
        %761 = vmatpush.msra.mxu0 0.0
        %762 = vmatpush.msra.mxu0 0.0
        %763 = vmatpush.msra.mxu0 0.0
        %764 = vmatpush.msra.mxu0 0.0
        %765 = vmatpush.msra.mxu0 0.0
        %766 = vmatpush.msra.mxu0 0.0
        %767 = vmatpush.msra.mxu0 %v711
        %768 = vmatpush.msra.mxu0 %v709
        %769 = vmatmul.f32.gmra.mxu0 %v713
        %v770 = vpop.f32.mrf.mxu0
        %v771 = vadd.f32 0.0, %v770
        %772 = vmatmul.f32.gmra.mxu0 %v716
        %v773 = vpop.f32.mrf.mxu0
        %v774 = vadd.f32 0.0, %v773
        %775 = vmatmul.f32.gmra.mxu0 %v719
        %v776 = vpop.f32.mrf.mxu0
        %v777 = vadd.f32 0.0, %v776
        %778 = vmatmul.f32.gmra.mxu0 %v722
        %v779 = vpop.f32.mrf.mxu0
        %v780 = vadd.f32 0.0, %v779
        %781 = vdwg.mxu0
        %v782 = vadd.f32 %v653, %v742
        %v783 = vadd.f32 %v654, %v771
        %v784 = vadd.f32 %v655, %v745
        %v785 = vadd.f32 %v656, %v774
        %v786 = vadd.f32 %v657, %v748
        %v787 = vadd.f32 %v658, %v777
        %v788 = vadd.f32 %v659, %v751
        %v789 = vadd.f32 %v660, %v780
        %s790 = scalar_lea.vmem [#allocation2], 128
        %v791 = vld [vmem:[%s790] sm:$0xff]
        %v792 = vld [vmem:[%s790 + $0x8] sm:$0xff]
        %v793 = vld [vmem:[%s790 + $0x10] sm:$0xff]
        %v794 = vld [vmem:[%s790 + $0x18] sm:$0xff]
        %v796 = vsel %vm294, %v791, 0
        %v799 = vsel %vm294, %v792, 0
        %v802 = vsel %vm294, %v793, 0
        %v805 = vsel %vm294, %v794, 0
        %807 = vmatpush.msra.mxu0 0.0
        %808 = vmatpush.msra.mxu0 0.0
        %809 = vmatpush.msra.mxu0 0.0
        %810 = vmatpush.msra.mxu0 0.0
        %811 = vmatpush.msra.mxu0 0.0
        %812 = vmatpush.msra.mxu0 0.0
        %813 = vmatpush.msra.mxu0 0.0
        %814 = vmatpush.msra.mxu0 0.0
        %815 = vmatpush.msra.mxu0 0.0
        %816 = vmatpush.msra.mxu0 0.0
        %817 = vmatpush.msra.mxu0 0.0
        %818 = vmatpush.msra.mxu0 0.0
        %819 = vmatpush.msra.mxu0 %v289
        %820 = vmatpush.msra.mxu0 %v288
        %821 = vmatpush.msra.mxu0 %v287
        %822 = vmatpush.msra.mxu0 %v286
        %823 = vmatmul.f32.gmra.mxu0 %v796
        %v824 = vpop.f32.mrf.mxu0
        %v825 = vadd.f32 0.0, %v824
        %826 = vmatmul.f32.gmra.mxu0 %v799
        %v827 = vpop.f32.mrf.mxu0
        %v828 = vadd.f32 0.0, %v827
        %829 = vmatmul.f32.gmra.mxu0 %v802
        %v830 = vpop.f32.mrf.mxu0
        %v831 = vadd.f32 0.0, %v830
        %832 = vmatmul.f32.gmra.mxu0 %v805
        %v833 = vpop.f32.mrf.mxu0
        %v834 = vadd.f32 0.0, %v833
        %835 = vdwg.mxu0
        %s836 = scalar_lea.vmem [#allocation4], 128
        %v837 = vld [vmem:[%s836] sm:$0xff]
        %v838 = vld [vmem:[%s836 + $0x8] sm:$0xff]
        %v839 = vld [vmem:[%s836 + $0x10] sm:$0xff]
        %v840 = vld [vmem:[%s836 + $0x18] sm:$0xff]
        %v842 = vsel %vm391, %v825, 0
        %v845 = vsel %vm391, %v828, 0
        %v848 = vsel %vm391, %v831, 0
        %v851 = vsel %vm391, %v834, 0
        %853 = vmatpush.msra.mxu0 0.0
        %854 = vmatpush.msra.mxu0 0.0
        %855 = vmatpush.msra.mxu0 0.0
        %856 = vmatpush.msra.mxu0 0.0
        %857 = vmatpush.msra.mxu0 0.0
        %858 = vmatpush.msra.mxu0 0.0
        %859 = vmatpush.msra.mxu0 0.0
        %860 = vmatpush.msra.mxu0 0.0
        %861 = vmatpush.msra.mxu0 0.0
        %862 = vmatpush.msra.mxu0 0.0
        %863 = vmatpush.msra.mxu0 0.0
        %864 = vmatpush.msra.mxu0 0.0
        %865 = vmatpush.msra.mxu0 0.0
        %866 = vmatpush.msra.mxu0 0.0
        %867 = vmatpush.msra.mxu0 %v839
        %868 = vmatpush.msra.mxu0 %v837
        %869 = vmatmul.f32.gmra.mxu0 %v842
        %v870 = vpop.f32.mrf.mxu0
        %v871 = vadd.f32 0.0, %v870
        %872 = vmatmul.f32.gmra.mxu0 %v845
        %v873 = vpop.f32.mrf.mxu0
        %v874 = vadd.f32 0.0, %v873
        %875 = vmatmul.f32.gmra.mxu0 %v848
        %v876 = vpop.f32.mrf.mxu0
        %v877 = vadd.f32 0.0, %v876
        %878 = vmatmul.f32.gmra.mxu0 %v851
        %v879 = vpop.f32.mrf.mxu0
        %v880 = vadd.f32 0.0, %v879
        %881 = vdwg.mxu0
        %882 = vmatpush.msra.mxu0 0.0
        %883 = vmatpush.msra.mxu0 0.0
        %884 = vmatpush.msra.mxu0 0.0
        %885 = vmatpush.msra.mxu0 0.0
        %886 = vmatpush.msra.mxu0 0.0
        %887 = vmatpush.msra.mxu0 0.0
        %888 = vmatpush.msra.mxu0 0.0
        %889 = vmatpush.msra.mxu0 0.0
        %890 = vmatpush.msra.mxu0 0.0
        %891 = vmatpush.msra.mxu0 0.0
        %892 = vmatpush.msra.mxu0 0.0
        %893 = vmatpush.msra.mxu0 0.0
        %894 = vmatpush.msra.mxu0 0.0
        %895 = vmatpush.msra.mxu0 0.0
        %896 = vmatpush.msra.mxu0 %v840
        %897 = vmatpush.msra.mxu0 %v838
        %898 = vmatmul.f32.gmra.mxu0 %v842
        %v899 = vpop.f32.mrf.mxu0
        %v900 = vadd.f32 0.0, %v899
        %901 = vmatmul.f32.gmra.mxu0 %v845
        %v902 = vpop.f32.mrf.mxu0
        %v903 = vadd.f32 0.0, %v902
        %904 = vmatmul.f32.gmra.mxu0 %v848
        %v905 = vpop.f32.mrf.mxu0
        %v906 = vadd.f32 0.0, %v905
        %907 = vmatmul.f32.gmra.mxu0 %v851
        %v908 = vpop.f32.mrf.mxu0
        %v909 = vadd.f32 0.0, %v908
        %910 = vdwg.mxu0
        %v911 = vadd.f32 %v782, %v871
        %v912 = vadd.f32 %v783, %v900
        %v913 = vadd.f32 %v784, %v874
        %v914 = vadd.f32 %v785, %v903
        %v915 = vadd.f32 %v786, %v877
        %v916 = vadd.f32 %v787, %v906
        %v917 = vadd.f32 %v788, %v880
        %v918 = vadd.f32 %v789, %v909
        %s919 = scalar_lea.vmem [#allocation2], 160
        %v920 = vld [vmem:[%s919] sm:$0xff]
        %v921 = vld [vmem:[%s919 + $0x8] sm:$0xff]
        %v922 = vld [vmem:[%s919 + $0x10] sm:$0xff]
        %v923 = vld [vmem:[%s919 + $0x18] sm:$0xff]
        %v925 = vsel %vm294, %v920, 0
        %v928 = vsel %vm294, %v921, 0
        %v931 = vsel %vm294, %v922, 0
        %v934 = vsel %vm294, %v923, 0
        %936 = vmatpush.msra.mxu0 0.0
        %937 = vmatpush.msra.mxu0 0.0
        %938 = vmatpush.msra.mxu0 0.0
        %939 = vmatpush.msra.mxu0 0.0
        %940 = vmatpush.msra.mxu0 0.0
        %941 = vmatpush.msra.mxu0 0.0
        %942 = vmatpush.msra.mxu0 0.0
        %943 = vmatpush.msra.mxu0 0.0
        %944 = vmatpush.msra.mxu0 0.0
        %945 = vmatpush.msra.mxu0 0.0
        %946 = vmatpush.msra.mxu0 0.0
        %947 = vmatpush.msra.mxu0 0.0
        %948 = vmatpush.msra.mxu0 %v289
        %949 = vmatpush.msra.mxu0 %v288
        %950 = vmatpush.msra.mxu0 %v287
        %951 = vmatpush.msra.mxu0 %v286
        %952 = vmatmul.f32.gmra.mxu0 %v925
        %v953 = vpop.f32.mrf.mxu0
        %v954 = vadd.f32 0.0, %v953
        %955 = vmatmul.f32.gmra.mxu0 %v928
        %v956 = vpop.f32.mrf.mxu0
        %v957 = vadd.f32 0.0, %v956
        %958 = vmatmul.f32.gmra.mxu0 %v931
        %v959 = vpop.f32.mrf.mxu0
        %v960 = vadd.f32 0.0, %v959
        %961 = vmatmul.f32.gmra.mxu0 %v934
        %v962 = vpop.f32.mrf.mxu0
        %v963 = vadd.f32 0.0, %v962
        %964 = vdwg.mxu0
        %s965 = scalar_lea.vmem [#allocation4], 160
        %v966 = vld [vmem:[%s965] sm:$0xff]
        %v967 = vld [vmem:[%s965 + $0x8] sm:$0xff]
        %v968 = vld [vmem:[%s965 + $0x10] sm:$0xff]
        %v969 = vld [vmem:[%s965 + $0x18] sm:$0xff]
        %v971 = vsel %vm391, %v954, 0
        %v974 = vsel %vm391, %v957, 0
        %v977 = vsel %vm391, %v960, 0
        %v980 = vsel %vm391, %v963, 0
        %982 = vmatpush.msra.mxu0 0.0
        %983 = vmatpush.msra.mxu0 0.0
        %984 = vmatpush.msra.mxu0 0.0
        %985 = vmatpush.msra.mxu0 0.0
        %986 = vmatpush.msra.mxu0 0.0
        %987 = vmatpush.msra.mxu0 0.0
        %988 = vmatpush.msra.mxu0 0.0
        %989 = vmatpush.msra.mxu0 0.0
        %990 = vmatpush.msra.mxu0 0.0
        %991 = vmatpush.msra.mxu0 0.0
        %992 = vmatpush.msra.mxu0 0.0
        %993 = vmatpush.msra.mxu0 0.0
        %994 = vmatpush.msra.mxu0 0.0
        %995 = vmatpush.msra.mxu0 0.0
        %996 = vmatpush.msra.mxu0 %v968
        %997 = vmatpush.msra.mxu0 %v966
        %998 = vmatmul.f32.gmra.mxu0 %v971
        %v999 = vpop.f32.mrf.mxu0
        %v1000 = vadd.f32 0.0, %v999
        %1001 = vmatmul.f32.gmra.mxu0 %v974
        %v1002 = vpop.f32.mrf.mxu0
        %v1003 = vadd.f32 0.0, %v1002
        %1004 = vmatmul.f32.gmra.mxu0 %v977
        %v1005 = vpop.f32.mrf.mxu0
        %v1006 = vadd.f32 0.0, %v1005
        %1007 = vmatmul.f32.gmra.mxu0 %v980
        %v1008 = vpop.f32.mrf.mxu0
        %v1009 = vadd.f32 0.0, %v1008
        %1010 = vdwg.mxu0
        %1011 = vmatpush.msra.mxu0 0.0
        %1012 = vmatpush.msra.mxu0 0.0
        %1013 = vmatpush.msra.mxu0 0.0
        %1014 = vmatpush.msra.mxu0 0.0
        %1015 = vmatpush.msra.mxu0 0.0
        %1016 = vmatpush.msra.mxu0 0.0
        %1017 = vmatpush.msra.mxu0 0.0
        %1018 = vmatpush.msra.mxu0 0.0
        %1019 = vmatpush.msra.mxu0 0.0
        %1020 = vmatpush.msra.mxu0 0.0
        %1021 = vmatpush.msra.mxu0 0.0
        %1022 = vmatpush.msra.mxu0 0.0
        %1023 = vmatpush.msra.mxu0 0.0
        %1024 = vmatpush.msra.mxu0 0.0
        %1025 = vmatpush.msra.mxu0 %v969
        %1026 = vmatpush.msra.mxu0 %v967
        %1027 = vmatmul.f32.gmra.mxu0 %v971
        %v1028 = vpop.f32.mrf.mxu0
        %v1029 = vadd.f32 0.0, %v1028
        %1030 = vmatmul.f32.gmra.mxu0 %v974
        %v1031 = vpop.f32.mrf.mxu0
        %v1032 = vadd.f32 0.0, %v1031
        %1033 = vmatmul.f32.gmra.mxu0 %v977
        %v1034 = vpop.f32.mrf.mxu0
        %v1035 = vadd.f32 0.0, %v1034
        %1036 = vmatmul.f32.gmra.mxu0 %v980
        %v1037 = vpop.f32.mrf.mxu0
        %v1038 = vadd.f32 0.0, %v1037
        %1039 = vdwg.mxu0
        %v1040 = vadd.f32 %v911, %v1000
        %v1041 = vadd.f32 %v912, %v1029
        %v1042 = vadd.f32 %v913, %v1003
        %v1043 = vadd.f32 %v914, %v1032
        %v1044 = vadd.f32 %v915, %v1006
        %v1045 = vadd.f32 %v916, %v1035
        %v1046 = vadd.f32 %v917, %v1009
        %v1047 = vadd.f32 %v918, %v1038
        %s1048 = scalar_lea.vmem [#allocation2], 192
        %v1049 = vld [vmem:[%s1048] sm:$0xff]
        %v1050 = vld [vmem:[%s1048 + $0x8] sm:$0xff]
        %v1051 = vld [vmem:[%s1048 + $0x10] sm:$0xff]
        %v1052 = vld [vmem:[%s1048 + $0x18] sm:$0xff]
        %v1054 = vsel %vm294, %v1049, 0
        %v1057 = vsel %vm294, %v1050, 0
        %v1060 = vsel %vm294, %v1051, 0
        %v1063 = vsel %vm294, %v1052, 0
        %1065 = vmatpush.msra.mxu0 0.0
        %1066 = vmatpush.msra.mxu0 0.0
        %1067 = vmatpush.msra.mxu0 0.0
        %1068 = vmatpush.msra.mxu0 0.0
        %1069 = vmatpush.msra.mxu0 0.0
        %1070 = vmatpush.msra.mxu0 0.0
        %1071 = vmatpush.msra.mxu0 0.0
        %1072 = vmatpush.msra.mxu0 0.0
        %1073 = vmatpush.msra.mxu0 0.0
        %1074 = vmatpush.msra.mxu0 0.0
        %1075 = vmatpush.msra.mxu0 0.0
        %1076 = vmatpush.msra.mxu0 0.0
        %1077 = vmatpush.msra.mxu0 %v289
        %1078 = vmatpush.msra.mxu0 %v288
        %1079 = vmatpush.msra.mxu0 %v287
        %1080 = vmatpush.msra.mxu0 %v286
        %1081 = vmatmul.f32.gmra.mxu0 %v1054
        %v1082 = vpop.f32.mrf.mxu0
        %v1083 = vadd.f32 0.0, %v1082
        %1084 = vmatmul.f32.gmra.mxu0 %v1057
        %v1085 = vpop.f32.mrf.mxu0
        %v1086 = vadd.f32 0.0, %v1085
        %1087 = vmatmul.f32.gmra.mxu0 %v1060
        %v1088 = vpop.f32.mrf.mxu0
        %v1089 = vadd.f32 0.0, %v1088
        %1090 = vmatmul.f32.gmra.mxu0 %v1063
        %v1091 = vpop.f32.mrf.mxu0
        %v1092 = vadd.f32 0.0, %v1091
        %1093 = vdwg.mxu0
        %s1094 = scalar_lea.vmem [#allocation4], 192
        %v1095 = vld [vmem:[%s1094] sm:$0xff]
        %v1096 = vld [vmem:[%s1094 + $0x8] sm:$0xff]
        %v1097 = vld [vmem:[%s1094 + $0x10] sm:$0xff]
        %v1098 = vld [vmem:[%s1094 + $0x18] sm:$0xff]
        %v1100 = vsel %vm391, %v1083, 0
        %v1103 = vsel %vm391, %v1086, 0
        %v1106 = vsel %vm391, %v1089, 0
        %v1109 = vsel %vm391, %v1092, 0
        %1111 = vmatpush.msra.mxu0 0.0
        %1112 = vmatpush.msra.mxu0 0.0
        %1113 = vmatpush.msra.mxu0 0.0
        %1114 = vmatpush.msra.mxu0 0.0
        %1115 = vmatpush.msra.mxu0 0.0
        %1116 = vmatpush.msra.mxu0 0.0
        %1117 = vmatpush.msra.mxu0 0.0
        %1118 = vmatpush.msra.mxu0 0.0
        %1119 = vmatpush.msra.mxu0 0.0
        %1120 = vmatpush.msra.mxu0 0.0
        %1121 = vmatpush.msra.mxu0 0.0
        %1122 = vmatpush.msra.mxu0 0.0
        %1123 = vmatpush.msra.mxu0 0.0
        %1124 = vmatpush.msra.mxu0 0.0
        %1125 = vmatpush.msra.mxu0 %v1097
        %1126 = vmatpush.msra.mxu0 %v1095
        %1127 = vmatmul.f32.gmra.mxu0 %v1100
        %v1128 = vpop.f32.mrf.mxu0
        %v1129 = vadd.f32 0.0, %v1128
        %1130 = vmatmul.f32.gmra.mxu0 %v1103
        %v1131 = vpop.f32.mrf.mxu0
        %v1132 = vadd.f32 0.0, %v1131
        %1133 = vmatmul.f32.gmra.mxu0 %v1106
        %v1134 = vpop.f32.mrf.mxu0
        %v1135 = vadd.f32 0.0, %v1134
        %1136 = vmatmul.f32.gmra.mxu0 %v1109
        %v1137 = vpop.f32.mrf.mxu0
        %v1138 = vadd.f32 0.0, %v1137
        %1139 = vdwg.mxu0
        %1140 = vmatpush.msra.mxu0 0.0
        %1141 = vmatpush.msra.mxu0 0.0
        %1142 = vmatpush.msra.mxu0 0.0
        %1143 = vmatpush.msra.mxu0 0.0
        %1144 = vmatpush.msra.mxu0 0.0
        %1145 = vmatpush.msra.mxu0 0.0
        %1146 = vmatpush.msra.mxu0 0.0
        %1147 = vmatpush.msra.mxu0 0.0
        %1148 = vmatpush.msra.mxu0 0.0
        %1149 = vmatpush.msra.mxu0 0.0
        %1150 = vmatpush.msra.mxu0 0.0
        %1151 = vmatpush.msra.mxu0 0.0
        %1152 = vmatpush.msra.mxu0 0.0
        %1153 = vmatpush.msra.mxu0 0.0
        %1154 = vmatpush.msra.mxu0 %v1098
        %1155 = vmatpush.msra.mxu0 %v1096
        %1156 = vmatmul.f32.gmra.mxu0 %v1100
        %v1157 = vpop.f32.mrf.mxu0
        %v1158 = vadd.f32 0.0, %v1157
        %1159 = vmatmul.f32.gmra.mxu0 %v1103
        %v1160 = vpop.f32.mrf.mxu0
        %v1161 = vadd.f32 0.0, %v1160
        %1162 = vmatmul.f32.gmra.mxu0 %v1106
        %v1163 = vpop.f32.mrf.mxu0
        %v1164 = vadd.f32 0.0, %v1163
        %1165 = vmatmul.f32.gmra.mxu0 %v1109
        %v1166 = vpop.f32.mrf.mxu0
        %v1167 = vadd.f32 0.0, %v1166
        %1168 = vdwg.mxu0
        %v1169 = vadd.f32 %v1040, %v1129
        %v1170 = vadd.f32 %v1041, %v1158
        %v1171 = vadd.f32 %v1042, %v1132
        %v1172 = vadd.f32 %v1043, %v1161
        %v1173 = vadd.f32 %v1044, %v1135
        %v1174 = vadd.f32 %v1045, %v1164
        %v1175 = vadd.f32 %v1046, %v1138
        %v1176 = vadd.f32 %v1047, %v1167
        %v1177 = vsub.f32 %v1169, %v1173
        %v1178 = vsub.f32 %v1170, %v1174
        %v1179 = vsub.f32 %v1171, %v1175
        %v1180 = vsub.f32 %v1172, %v1176
        %v1181 = vand.u32 2147483647, %v1177
        %v1182 = vand.u32 2147483647, %v1178
        %v1183 = vand.u32 2147483647, %v1179
        %v1184 = vand.u32 2147483647, %v1180
        %vm1185 = vcmp.lt.f32.partialorder %v1181, 1.0
        %vm1186 = vcmp.lt.f32.partialorder %v1182, 1.0
        %vm1187 = vcmp.lt.f32.partialorder %v1183, 1.0
        %vm1188 = vcmp.lt.f32.partialorder %v1184, 1.0
        %v1189 = vmul.f32 %v1177, 0.5
        %v1190 = vmul.f32 %v1178, 0.5
        %v1191 = vmul.f32 %v1179, 0.5
        %v1192 = vmul.f32 %v1180, 0.5
        %v1193 = vmul.f32 %v1189, %v1177
        %v1194 = vmul.f32 %v1190, %v1178
        %v1195 = vmul.f32 %v1191, %v1179
        %v1196 = vmul.f32 %v1192, %v1180
        %v1197 = vsub.f32 %v1181, 0.5
        %v1198 = vsub.f32 %v1182, 0.5
        %v1199 = vsub.f32 %v1183, 0.5
        %v1200 = vsub.f32 %v1184, 0.5
        %v1201 = vsel %vm1185, %v1193, %v1197
        %v1202 = vsel %vm1186, %v1194, %v1198
        %v1203 = vsel %vm1187, %v1195, %v1199
        %v1204 = vsel %vm1188, %v1196, %v1200
        %vm1205 = vcmask 785408
        %v1206 = vsel %vm1205, %v1202, 0.0
        %v1207 = vadd.f32 %v1201, %v1206
        %v1208 = vadd.f32 %v1207, %v1203
        %v1209 = vsel %vm1205, %v1204, 0.0
        %v1210 = vadd.f32 %v1208, %v1209
        %1211 = vadd.xlane.f32.xlu0 %v1210
        %v1212 = vpop.xlane.xlu0 %1211
        %v1213 = vrot.slane %v1212, 4
        %v1214 = vadd.f32 %v1212, %v1213
        %v1215 = vrot.slane %v1214, 2
        %v1216 = vadd.f32 %v1214, %v1215
        %v1217 = vrot.slane %v1216, 1
        %v1218 = vadd.f32 %v1216, %v1217
        %s1219 = vtos %v1218
        %v1220 = vstv %s1219
        %vm1221 = vcmask 0
        %1222 = vst.msk [vmem:[%s285] sm:$0x1] %vm1221, %v1220
        %p1223 = scmp.lt.s32.totalorder %s17, 1
        %s1224 = scalar_select %p1223, %s17, 1
        %s1225 = scalar_lea.vmem %s4, %s1224
        // Predicated region
        $region53: #{tpu_custom_call.1} parent=35 // pred_check
          %p1226 = pneg %p129
        $region54: #{tpu_custom_call.1} parent=35 // pred_check_branch
          %1228 = sbr.rel (%p1226) target = $region56
        $region55: #{tpu_custom_call.1} parent=35 // pred_region
          _
        $region56: #{tpu_custom_call.1} parent=35 // pred_fallthru
          _
      $region36: #{tpu_custom_call.1} parent=5 // pred_fallthru
        _
      %p1229 = scmp.le.s32.totalorder 2, %s12
      // Predicated region
      $region57: #{tpu_custom_call.1} parent=5 // pred_check
        %p1230 = pneg %p1229
      $region58: #{tpu_custom_call.1} parent=5 // pred_check_branch
        %1232 = sbr.rel (%p1230) target = $region60
      $region59: #{tpu_custom_call.1} parent=5 // pred_region
        %s1233 = ssub.s32 %s12, 2
        // Predicated region
        $region61: #{tpu_custom_call.1} parent=59 // pred_check
          %p1234 = pneg %p135
        $region62: #{tpu_custom_call.1} parent=59 // pred_check_branch
          %1236 = sbr.rel (%p1234) target = $region64
        $region63: #{tpu_custom_call.1} parent=59 // pred_region
          %p1237 = scmp.lt.s32.totalorder %s18, 1
          %s1238 = scalar_select %p1237, %s18, 1
          %s1239 = scalar_lea.vmem %s4, %s1238
        $region64: #{tpu_custom_call.1} parent=59 // pred_fallthru
          _
      $region60: #{tpu_custom_call.1} parent=5 // pred_fallthru
        _
    $region6: #{tpu_custom_call.1} parent=1 // loop_footer
      %s16 = sadd.s32 1, %s12
    $region7: #{tpu_custom_call.1} parent=1 // loop_footer_branch
      %11 = sbr.rel target = $region3
    $region8: #{tpu_custom_call.1} parent=1 // loop_exit
      _
    %1240 = vsyncpa [#allocation3], 1
    %s1241 = scalar_lea.sflag [#allocation3], 1
    %1242 = vsyncpa %s1241, 1
    %1243 = vsyncpa [#allocation5], 1

</llo_original>
